<compile_context>
chip_gen: v6e
topology: v6e:2x2x1
jax: 0.10.0
libtpu: 0.0.40
codegen_flags: <defaults>
</compile_context>

<pallas_src>
import functools

import jax
import jax.numpy as jnp
from jax.experimental import pallas as pl
from jax.experimental.pallas import tpu as pltpu


def _round_up(x: int, m: int) -> int:
    return ((x + m - 1) // m) * m


@functools.lru_cache(maxsize=None)
def _vmem_limit_bytes() -> int:
    """~75% of physical VMEM: ~48 MiB on v7x, ~96 MiB on v5e/v6e."""
    cap = 64 * 1024 * 1024
    try:
        cap = int(pltpu.get_tpu_info().vmem_capacity_bytes)
    except Exception:
        pass
    return min(int(cap * 3 // 4), 112 * 1024 * 1024)


# ----------------------------------------------------------------------------
# Fused kernel: y = x @ W + b, one (TM, TN) output tile, reduced over K grid.
# ----------------------------------------------------------------------------
def _linear_kernel(x_ref, w_ref, b_ref, o_ref, acc_ref):
    @pl.when(pl.program_id(2) == 0)
    def _init():
        acc_ref[...] = jnp.zeros_like(acc_ref)

    # bf16 MXU operands (x cast in-kernel -> no extra HBM pass), f32 accum.
    acc_ref[...] += jnp.dot(
        x_ref[...].astype(jnp.bfloat16),
        w_ref[...],
        preferred_element_type=jnp.float32,
    )

    @pl.when(pl.program_id(2) == pl.num_programs(2) - 1)
    def _finalize():
        # Bias add / epilogue in f32 (v5e VPU has no bf16 elementwise).
        o_ref[...] = (acc_ref[...] + b_ref[...]).astype(o_ref.dtype)


def pack_linear_params(w: jax.Array, b: jax.Array):
    """One-time Linear param packing: bf16 cast + lane-dense zero pad."""
    K, N = w.shape
    K_pad = _round_up(K, 128)
    N_pad = _round_up(N, 128)
    w_p = jnp.zeros((K_pad, N_pad), jnp.bfloat16).at[:K, :N].set(
        w.astype(jnp.bfloat16))
    b_p = jnp.zeros((1, N_pad), jnp.float32).at[0, :N].set(
        b.astype(jnp.float32))
    return w_p, b_p, (K, N)


def linear_forward(x2d: jax.Array, w_packed: jax.Array, b_packed: jax.Array,
                   kn, *, tm_max: int = 1024, out_dtype=None) -> jax.Array:
    """y = x2d @ W + b using pre-packed (bf16, padded) W / b."""
    M, K = x2d.shape
    K_true, N_true = kn
    assert K == K_true
    K_pad, N_pad = w_packed.shape
    out_dtype = x2d.dtype if out_dtype is None else out_dtype

    # ---- tile selection ----------------------------------------------------
    M8 = _round_up(M, 8)
    TN = 256 if N_pad % 256 == 0 else 128        # 256-aligned for v6e/v7x MXU
    TK = min(K_pad, 512)
    while K_pad % TK:                            # K_pad is a 128-multiple
        TK -= 128
    grid_n = N_pad // TN
    grid_k = K_pad // TK

    TM = min(tm_max, M8)
    # v7x has 2 TensorCores: guarantee >= 2 parallel grid steps when possible.
    if grid_n == 1 and TM == M8 and M8 >= 16:
        TM = max(8, (M8 // 16) * 8)
    M_pad = _round_up(M8, TM)
    grid_m = M_pad // TM

    # ---- x: no materialized pad/cast copy when already aligned --------------
    if M_pad == M and K_pad == K:
        x_in = x2d                               # read from HBM by the kernel only
    else:
        x_in = jnp.zeros((M_pad, K_pad), x2d.dtype).at[:M, :K].set(x2d)

    out = pl.pallas_call(
        _linear_kernel,
        out_shape=jax.ShapeDtypeStruct((M_pad, N_pad), out_dtype),
        grid_spec=pltpu.PrefetchScalarGridSpec(
            num_scalar_prefetch=0,
            grid=(grid_m, grid_n, grid_k),
            in_specs=[
                pl.BlockSpec((TM, TK), lambda i, j, k: (i, k)),   # activations
                pl.BlockSpec((TK, TN), lambda i, j, k: (k, j)),   # weights bf16
                pl.BlockSpec((1, TN), lambda i, j, k: (0, j)),    # bias f32
            ],
            out_specs=pl.BlockSpec((TM, TN), lambda i, j, k: (i, j)),
            scratch_shapes=[pltpu.VMEM((TM, TN), jnp.float32)],
        ),
        compiler_params=pltpu.CompilerParams(
            dimension_semantics=("parallel", "parallel", "arbitrary"),
            vmem_limit_bytes=_vmem_limit_bytes(),
        ),
    )(x_in, w_packed, b_packed)

    # ---- output: skip the slice/copy entirely for aligned shapes ------------
    if M_pad == M and N_pad == N_true:
        return out
    return out[:M, :N_true]


# ----------------------------------------------------------------------------
# DeviceMover equivalent
# ----------------------------------------------------------------------------
class DeviceMover:
    """JAX/Pallas equivalent of the torch DeviceMover wrapper.

    torch's `arg.to(device)` maps to jax.device_put, a no-op when the array is
    already resident on `device`; the wrapped module's Pallas kernel then
    performs the only HBM->VMEM DMA of each activation via its BlockSpecs.
    """

    def __init__(self, module, device):
        self.device = device
        # Wrapped module's params are already device-resident JAX arrays
        # (torch's DeviceMover also moved them once at construction).
        self.module = module

    def _to_device(self, a):
        return jax.device_put(a, self.device) if isinstance(a, jax.Array) else a

    def __call__(self, *args, **kwargs):
        args = [self._to_device(a) for a in args]
        kwargs = {k: self._to_device(v) for k, v in kwargs.items()}
        return self.module(*args, **kwargs)


class TinyLinear:
    """Deterministic small Linear playing the role of the wrapped `module`.

    W / b are packed (bf16 cast + lane-dense pad) exactly once here, so each
    forward call only moves the activations through HBM.
    """

    def __init__(self, hidden_in: int, hidden_out: int, key):
        k_w, k_b = jax.random.split(key)
        # layout: W is [hidden_in, hidden_out] (transposed vs torch nn.Linear)
        self.w = (jax.random.normal(k_w, (hidden_in, hidden_out), jnp.float32)
                  * (1.0 / hidden_in ** 0.5))
        self.b = jax.random.normal(k_b, (hidden_out,), jnp.float32) * 0.01
        self.w_packed, self.b_packed, self.kn = pack_linear_params(self.w, self.b)

    def __call__(self, x):
        B, S, H = x.shape
        y = linear_forward(x.reshape(B * S, H), self.w_packed, self.b_packed,
                           self.kn)
        return y.reshape(B, S, -1)


if __name__ == "__main__":
    key = jax.random.PRNGKey(0)
    k_x, k_m = jax.random.split(key)

    batch, seq, hidden = 2, 8, 32
    x = jax.random.normal(k_x, (batch, seq, hidden), jnp.float32)

    inner = TinyLinear(hidden, hidden, k_m)
    device = jax.devices()[0]
    mover = DeviceMover(inner, device)

    y = mover(x)
    jax.block_until_ready(y)

    # Reference: bf16-operand matmul with f32 accumulation (matches the MXU
    # precision the kernel uses; documented deviation from torch f32 matmul).
    xb = x.reshape(-1, hidden).astype(jnp.bfloat16).astype(jnp.float32)
    wb = inner.w.astype(jnp.bfloat16).astype(jnp.float32)
    y_ref = (jnp.einsum("mk,kn->mn", xb, wb,
                        precision=jax.lax.Precision.HIGHEST) + inner.b)
    y_ref = y_ref.reshape(batch, seq, hidden)

    assert y.shape == (batch, seq, hidden)
    assert y.dtype == x.dtype
    assert jnp.allclose(y, y_ref, atol=2e-2, rtol=2e-2)

    print("KERNEL_OK")
</pallas_src>

<mosaic_0001>
module attributes {stable_mosaic.version = 11 : i64} {
  func.func @_linear_kernel(%arg0: i32, %arg1: i32, %arg2: i32, %arg3: memref<8x128xf32, #tpu.memory_space<vmem>>, %arg4: memref<128x128xbf16, #tpu.memory_space<vmem>>, %arg5: memref<1x128xf32, #tpu.memory_space<vmem>>, %arg6: memref<8x128xf32, #tpu.memory_space<vmem>>, %arg7: memref<8x128xf32, #tpu.memory_space<vmem>>) attributes {dimension_semantics = [#tpu.dimension_semantics<parallel>, #tpu.dimension_semantics<parallel>, #tpu.dimension_semantics<arbitrary>], iteration_bounds = array<i64: 2, 1, 1>, scalar_prefetch = 0 : i64, scratch_operands = 1 : i64, tpu.core_type = #tpu.core_type<tc>, window_params = [{transform_indices = @transform_0, window_bounds = array<i64: 8, 128>}, {transform_indices = @transform_1, window_bounds = array<i64: 128, 128>}, {transform_indices = @transform_2, window_bounds = array<i64: 1, 128>}, {transform_indices = @transform_3, window_bounds = array<i64: 8, 128>}]} {
    %c0_i32 = arith.constant 0 : i32
    %0 = arith.cmpi eq, %arg2, %c0_i32 : i32
    %1 = arith.extui %0 : i1 to i32
    %c0_i32_0 = arith.constant 0 : i32
    %2 = arith.cmpi ne, %1, %c0_i32_0 : i32
    scf.if %2 {
      %cst_10 = arith.constant 0.000000e+00 : f32
      %13 = vector.broadcast %cst_10 : f32 to vector<8x128xf32>
      %c0_11 = arith.constant 0 : index
      %c0_12 = arith.constant 0 : index
      %14 = vector.load %arg7[%c0_11, %c0_12] : memref<8x128xf32, #tpu.memory_space<vmem>>, vector<8x128xf32>
      tpu.vector_store %arg7[%c0_11, %c0_12], %13 {strides = array<i32>} : memref<8x128xf32, #tpu.memory_space<vmem>>, vector<8x128xf32>,
    } else {
    }
    %c0 = arith.constant 0 : index
    %c0_1 = arith.constant 0 : index
    %3 = vector.load %arg7[%c0, %c0_1] : memref<8x128xf32, #tpu.memory_space<vmem>>, vector<8x128xf32>
    %c0_2 = arith.constant 0 : index
    %c0_3 = arith.constant 0 : index
    %4 = vector.load %arg3[%c0_2, %c0_3] : memref<8x128xf32, #tpu.memory_space<vmem>>, vector<8x128xf32>
    %5 = arith.truncf %4 : vector<8x128xf32> to vector<8x128xbf16>
    %c0_4 = arith.constant 0 : index
    %c0_5 = arith.constant 0 : index
    %6 = vector.load %arg4[%c0_4, %c0_5] : memref<128x128xbf16, #tpu.memory_space<vmem>>, vector<128x128xbf16>
    %cst = arith.constant dense<0.000000e+00> : vector<8x128xf32>
    %7 = tpu.matmul %5, %6, %cst {dimension_numbers = #tpu.dot_dimension_numbers<[1], [0], [0], [1], [0, 0, 1, 1], [], []>} : vector<8x128xbf16>, vector<128x128xbf16>, vector<8x128xf32> -> vector<8x128xf32>
    %8 = arith.addf %3, %7 : vector<8x128xf32>
    %c0_6 = arith.constant 0 : index
    %c0_7 = arith.constant 0 : index
    %9 = vector.load %arg7[%c0_6, %c0_7] : memref<8x128xf32, #tpu.memory_space<vmem>>, vector<8x128xf32>
    tpu.vector_store %arg7[%c0_6, %c0_7], %8 {strides = array<i32>} : memref<8x128xf32, #tpu.memory_space<vmem>>, vector<8x128xf32>,
    %c0_i32_8 = arith.constant 0 : i32
    %10 = arith.cmpi eq, %arg2, %c0_i32_8 : i32
    %11 = arith.extui %10 : i1 to i32
    %c0_i32_9 = arith.constant 0 : i32
    %12 = arith.cmpi ne, %11, %c0_i32_9 : i32
    scf.if %12 {
      %c0_10 = arith.constant 0 : index
      %c0_11 = arith.constant 0 : index
      %13 = vector.load %arg7[%c0_10, %c0_11] : memref<8x128xf32, #tpu.memory_space<vmem>>, vector<8x128xf32>
      %c0_12 = arith.constant 0 : index
      %c0_13 = arith.constant 0 : index
      %14 = vector.load %arg5[%c0_12, %c0_13] : memref<1x128xf32, #tpu.memory_space<vmem>>, vector<1x128xf32>
      %15 = vector.broadcast %14 : vector<1x128xf32> to vector<8x128xf32>
      %16 = arith.addf %13, %15 : vector<8x128xf32>
      %c0_14 = arith.constant 0 : index
      %c0_15 = arith.constant 0 : index
      %17 = vector.load %arg6[%c0_14, %c0_15] : memref<8x128xf32, #tpu.memory_space<vmem>>, vector<8x128xf32>
      tpu.vector_store %arg6[%c0_14, %c0_15], %16 {strides = array<i32>} : memref<8x128xf32, #tpu.memory_space<vmem>>, vector<8x128xf32>,
    } else {
    }
    return
  }
  func.func @transform_0(%arg0: i32, %arg1: i32, %arg2: i32) -> (i32, i32) {
    %c0_i32 = arith.constant 0 : i32
    return %arg0, %arg2 : i32, i32
  }
  func.func @transform_1(%arg0: i32, %arg1: i32, %arg2: i32) -> (i32, i32) {
    %c0_i32 = arith.constant 0 : i32
    return %arg2, %arg1 : i32, i32
  }
  func.func @transform_2(%arg0: i32, %arg1: i32, %arg2: i32) -> (i32, i32) {
    %c0_i32 = arith.constant 0 : i32
    %c0_i32_0 = arith.constant 0 : i32
    return %c0_i32, %arg1 : i32, i32
  }
  func.func @transform_3(%arg0: i32, %arg1: i32, %arg2: i32) -> (i32, i32) {
    %c0_i32 = arith.constant 0 : i32
    return %arg0, %arg1 : i32, i32
  }
}

</mosaic_0001>

<llo_original>
// kernel: tpu_custom_call.1
$region0: #{tpu_custom_call.1}
  #allocation0 [shape = 'u32[]', space=smem, size = 0x4, offset = 0x4, fixed_abs, tag = 'smem constant byte address 0x4 - core index']
  #allocation1 [shape = 'u32[144,128]{1,0:T(1,128)}', space=vmem, size = 0x12000, scoped, tag = 'internal scratch']
  #allocation2 [shape = 'f32[8,128]{1,0:T(8,128)}', space=vmem, size = 0x1000, scoped, tag = 'scratch operand']
  %s0 = inlined_call_operand.hbm [shape: f32[16,128], index: 0, kind: input, shape index: {}]
  %s1 = inlined_call_operand.hbm [shape: bf16[128,128], index: 1, kind: input, shape index: {}]
  %s2 = inlined_call_operand.vmem [shape: f32[1,128], index: 2, kind: input, shape index: {}]
  %s3 = inlined_call_operand.hbm [shape: f32[16,128], index: 3, kind: output, shape index: {}]
  %s4 = sld [smem:[#allocation0]]
  $region61: #{tpu_custom_call.1} parent=0
    _
  %s6 = ssub.s32 1, %s4
  %s7 = scalar_select 0, %s6, %s4
  $region1: #{tpu_custom_call.1} parent=0
    #allocation3 [shape = 'u8[8192]{0}', space=vmem, size = 0x2000, scoped, tag = 'input window, operand 0']
    #allocation4 [shape = 's32[2]{0}', space=sflag, size = 0x8, scoped, tag = 'scoped memory for tpu_custom_call.1']
    #allocation5 [shape = 's32[2]{0}', space=sflag, size = 0x8, scoped, tag = 'scoped memory for tpu_custom_call.1']
    #allocation6 [shape = 'u8[32768]{0}', space=vmem, size = 0x8000, scoped, tag = 'input window, operand 1, single buffered']
    #allocation7 [shape = 's32[1]{0}', space=sflag, size = 0x4, scoped, tag = 'scoped memory for tpu_custom_call.1']
    #allocation8 [shape = 'u8[8192]{0}', space=vmem, size = 0x2000, scoped, tag = 'output window, operand 0']
    %8 = vsyncpa [#allocation4], 0
    %s9 = scalar_lea.sflag [#allocation4], 1
    %10 = vsyncpa %s9, 0
    %11 = vsyncpa [#allocation7], 0
    %12 = vsyncpa [#allocation5], 0
    %s13 = scalar_lea.sflag [#allocation5], 1
    %14 = vsyncpa %s13, 0
    loop: start=0, step=1, limit=4
    $region2: #{tpu_custom_call.1} parent=1 // loop_pre_header
      _
    $region3: #{tpu_custom_call.1} parent=1 // loop_header
      %s16 = sphi 0, %s20
      %p17 = scmp.ge.s32.totalorder %s16, 4
      %s23 = sphi 0, %s42
      %s24 = sphi 0, %s38
      %s25 = sphi 0, %s34
      %s26 = sphi 0, %s23
      %s27 = sphi 0, %s24
      %s28 = sphi 0, %s25
      %s29 = sphi 0, %s26
      %s30 = sphi 0, %s27
      %s31 = sphi 0, %s28
      %s47 = sphi 0, %s49
      %s50 = sphi 0, %s47
      %s51 = sphi 0, %s50
      %s67 = sphi 0, %s51
      %s75 = sphi 0, %s77
      %s78 = sphi 0, %s75
      %s79 = sphi 0, %s78
      %s95 = sphi 0, %s79
      %s101 = sphi 0, %s103
      %s104 = sphi 0, %s101
      %s105 = sphi 0, %s104
      %s121 = sphi 0, %s105
      %s129 = sphi 0, %s131
      %s132 = sphi 0, %s129
      %s133 = sphi 0, %s132
      %s149 = sphi 0, %s133
    $region4: #{tpu_custom_call.1} parent=1 // loop_header_branch
      %19 = sbr.rel (%p17) target = $region8
    $region5: #{tpu_custom_call.1} parent=1 // loop_body
      %s21 = ssub.s32 %s16, 1
      %s22 = ssub.s32 %s16, 2
      %s32 = sadd.s32 1, %s25
      %p33 = scmp.ge.s32.totalorder %s32, 1
      %s34 = scalar_select %p33, 0, %s32
      %s35 = sadd.s32 1, %s24
      %s36 = scalar_select %p33, %s35, %s24
      %p37 = scmp.ge.s32.totalorder %s36, 1
      %s38 = scalar_select %p37, 0, %s36
      %s39 = sadd.s32 1, %s23
      %s40 = scalar_select %p37, %s39, %s23
      %p41 = scmp.ge.s32.totalorder %s40, 2
      %s42 = scalar_select %p41, 0, %s40
      %s43 = ssub.s32 %s23, %s42
      %s44 = ssub.s32 %s25, %s34
      %s45 = sor.u32 %s43, %s44
      %p46 = scmp.eq.s32.totalorder %s45, 0
      %s48 = sadd.s32 %s47, 1
      %s49 = scalar_select %p46, %s47, %s48
      %p52 = pneg %p46
      %p53 = scmp.eq.s32.totalorder %s16, 1
      %p54 = por %p52, %p53
      %p55 = scmp.ne.s32.totalorder %s47, %s50
      %p56 = scmp.eq.s32.totalorder %s16, 0
      %p57 = por %p55, %p56
      %p58 = scmp.ne.s32.totalorder %s47, %s50
      %p59 = scmp.eq.s32.totalorder %s21, 1
      %p60 = por %p58, %p59
      %p61 = scmp.ne.s32.totalorder %s50, %s51
      %p62 = scmp.eq.s32.totalorder %s21, 0
      %p63 = por %p61, %p62
      %p64 = scmp.ne.s32.totalorder %s50, %s51
      %p65 = scmp.eq.s32.totalorder %s22, 1
      %p66 = por %p64, %p65
      %p68 = scmp.ne.s32.totalorder %s51, %s67
      %p69 = scmp.eq.s32.totalorder %s22, 0
      %p70 = por %p68, %p69
      %s71 = ssub.s32 %s25, %s34
      %s72 = ssub.s32 %s24, %s38
      %s73 = sor.u32 %s71, %s72
      %p74 = scmp.eq.s32.totalorder %s73, 0
      %s76 = sadd.s32 %s75, 1
      %s77 = scalar_select %p74, %s75, %s76
      %p80 = pneg %p74
      %p81 = scmp.eq.s32.totalorder %s16, 1
      %p82 = por %p80, %p81
      %p83 = scmp.ne.s32.totalorder %s75, %s78
      %p84 = scmp.eq.s32.totalorder %s16, 0
      %p85 = por %p83, %p84
      %p86 = scmp.ne.s32.totalorder %s75, %s78
      %p87 = scmp.eq.s32.totalorder %s21, 1
      %p88 = por %p86, %p87
      %p89 = scmp.ne.s32.totalorder %s78, %s79
      %p90 = scmp.eq.s32.totalorder %s21, 0
      %p91 = por %p89, %p90
      %p92 = scmp.ne.s32.totalorder %s78, %s79
      %p93 = scmp.eq.s32.totalorder %s22, 1
      %p94 = por %p92, %p93
      %p96 = scmp.ne.s32.totalorder %s79, %s95
      %p97 = scmp.eq.s32.totalorder %s22, 0
      %p98 = por %p96, %p97
      %s99 = ssub.s32 %s24, %s38
      %p100 = scmp.eq.s32.totalorder %s99, 0
      %s102 = sadd.s32 %s101, 1
      %s103 = scalar_select %p100, %s101, %s102
      %p106 = pneg %p100
      %p107 = scmp.eq.s32.totalorder %s16, 1
      %p108 = por %p106, %p107
      %p109 = scmp.ne.s32.totalorder %s101, %s104
      %p110 = scmp.eq.s32.totalorder %s16, 0
      %p111 = por %p109, %p110
      %p112 = scmp.ne.s32.totalorder %s101, %s104
      %p113 = scmp.eq.s32.totalorder %s21, 1
      %p114 = por %p112, %p113
      %p115 = scmp.ne.s32.totalorder %s104, %s105
      %p116 = scmp.eq.s32.totalorder %s21, 0
      %p117 = por %p115, %p116
      %p118 = scmp.ne.s32.totalorder %s104, %s105
      %p119 = scmp.eq.s32.totalorder %s22, 1
      %p120 = por %p118, %p119
      %p122 = scmp.ne.s32.totalorder %s105, %s121
      %p123 = scmp.eq.s32.totalorder %s22, 0
      %p124 = por %p122, %p123
      %s125 = ssub.s32 %s23, %s42
      %s126 = ssub.s32 %s24, %s38
      %s127 = sor.u32 %s125, %s126
      %p128 = scmp.eq.s32.totalorder %s127, 0
      %s130 = sadd.s32 %s129, 1
      %s131 = scalar_select %p128, %s129, %s130
      %p134 = pneg %p128
      %p135 = scmp.eq.s32.totalorder %s16, 1
      %p136 = por %p134, %p135
      %p137 = scmp.ne.s32.totalorder %s129, %s132
      %p138 = scmp.eq.s32.totalorder %s16, 0
      %p139 = por %p137, %p138
      %p140 = scmp.ne.s32.totalorder %s129, %s132
      %p141 = scmp.eq.s32.totalorder %s21, 1
      %p142 = por %p140, %p141
      %p143 = scmp.ne.s32.totalorder %s132, %s133
      %p144 = scmp.eq.s32.totalorder %s21, 0
      %p145 = por %p143, %p144
      %p146 = scmp.ne.s32.totalorder %s132, %s133
      %p147 = scmp.eq.s32.totalorder %s22, 1
      %p148 = por %p146, %p147
      %p150 = scmp.ne.s32.totalorder %s133, %s149
      %p151 = scmp.eq.s32.totalorder %s22, 0
      %p152 = por %p150, %p151
      %p153 = scmp.le.s32.totalorder 1, %s16
      %p154 = scmp.lt.s32.totalorder %s16, 3
      %p155 = pnand %p153, %p154
      %p156 = pneg %p155
      // Predicated region
      $region9: #{tpu_custom_call.1} parent=5 // pred_check
        _
      $region10: #{tpu_custom_call.1} parent=5 // pred_check_branch
        %158 = sbr.rel (%p155) target = $region12
      $region11: #{tpu_custom_call.1} parent=5 // pred_region
        %s159 = ssub.s32 %s16, 1
        // Predicated region
        $region13: #{tpu_custom_call.1} parent=11 // pred_check
          %p160 = pneg %p91
        $region14: #{tpu_custom_call.1} parent=11 // pred_check_branch
          %162 = sbr.rel (%p160) target = $region16
        $region15: #{tpu_custom_call.1} parent=11 // pred_region
          %s163 = smul.u32 16, %s28
          %s165 = ssub.s32 1024, 1024
          %166 = vsyncadd [#allocation7], %s165
          %s167 = sadd.s32 %s27, %s163
          %s168 = smul.addr %s167, 64
          %s169 = scalar_lea.hbm %s1, %s168
          %s170 = sshll.u32 [#allocation6], 4
          %s171 = int_to_ptr.vmem [resolvable:$true] %s170
          %176 = dma.hbm_to_vmem [thread:$0]  %s169, 1024, %s171, [#allocation7], 64, 64, 4
        $region16: #{tpu_custom_call.1} parent=11 // pred_fallthru
          _
        // Predicated region
        $region17: #{tpu_custom_call.1} parent=11 // pred_check
          %p177 = pneg %p117
        $region18: #{tpu_custom_call.1} parent=11 // pred_check_branch
          %179 = sbr.rel (%p177) target = $region20
        $region19: #{tpu_custom_call.1} parent=11 // pred_region
          %p180 = scmp.lt.s32.totalorder %s27, 0
          %s181 = scalar_select %p180, %s27, 0
          %s182 = scalar_lea.vmem %s2, %s181
        $region20: #{tpu_custom_call.1} parent=11 // pred_fallthru
          _
      $region12: #{tpu_custom_call.1} parent=5 // pred_fallthru
        _
      %p183 = scmp.lt.s32.totalorder %s16, 2
      // Predicated region
      $region21: #{tpu_custom_call.1} parent=5 // pred_check
        %p184 = pneg %p183
      $region22: #{tpu_custom_call.1} parent=5 // pred_check_branch
        %186 = sbr.rel (%p184) target = $region24
      $region23: #{tpu_custom_call.1} parent=5 // pred_region
        // Predicated region
        $region25: #{tpu_custom_call.1} parent=23 // pred_check
          %p187 = pneg %p57
        $region26: #{tpu_custom_call.1} parent=23 // pred_check_branch
          %189 = sbr.rel (%p187) target = $region28
        $region27: #{tpu_custom_call.1} parent=23 // pred_region
          %s190 = sand.u32 %s47, 1
          %s191 = scalar_lea.sflag [#allocation4], %s190
          %s192 = sand.u32 %s47, 1
          %s193 = smul.addr %s192, 8
          %s194 = scalar_lea.vmem [#allocation3], %s193
          %s196 = ssub.s32 128, 128
          %197 = vsyncadd %s191, %s196
          %s198 = sadd.s32 %s25, %s23
          %s199 = smul.addr %s198, 128
          %s200 = scalar_lea.hbm %s0, %s199
          %s202 = sshll.u32 %s194, 4
          %s203 = int_to_ptr.vmem [resolvable:$true] %s202
          %205 = dma.hbm_to_vmem [thread:$0]  %s200, 128, %s203, %s191
        $region28: #{tpu_custom_call.1} parent=23 // pred_fallthru
          _
      $region24: #{tpu_custom_call.1} parent=5 // pred_fallthru
        _
      %p206 = scmp.le.s32.totalorder 1, %s16
      %p207 = scmp.lt.s32.totalorder %s16, 3
      %p208 = pnand %p206, %p207
      %p209 = pneg %p208
      // Predicated region
      $region29: #{tpu_custom_call.1} parent=5 // pred_check
        _
      $region30: #{tpu_custom_call.1} parent=5 // pred_check_branch
        %211 = sbr.rel (%p208) target = $region32
      $region31: #{tpu_custom_call.1} parent=5 // pred_region
        %s212 = ssub.s32 %s16, 1
        %s213 = sand.u32 %s50, 1
        %s214 = scalar_lea.sflag [#allocation4], %s213
        %s215 = sand.u32 %s50, 1
        %s216 = smul.addr %s215, 8
        %s217 = scalar_lea.vmem [#allocation3], %s216
        // Predicated region
        $region33: #{tpu_custom_call.1} parent=31 // pred_check
          %p218 = pneg %p63
        $region34: #{tpu_custom_call.1} parent=31 // pred_check_branch
          %220 = sbr.rel (%p218) target = $region36
        $region35: #{tpu_custom_call.1} parent=31 // pred_region
          %221 = dma.done %s214, 128
        $region36: #{tpu_custom_call.1} parent=31 // pred_fallthru
          _
        // Predicated region
        $region37: #{tpu_custom_call.1} parent=31 // pred_check
          %p222 = pneg %p91
        $region38: #{tpu_custom_call.1} parent=31 // pred_check_branch
          %224 = sbr.rel (%p222) target = $region40
        $region39: #{tpu_custom_call.1} parent=31 // pred_region
          %225 = dma.done [#allocation7], 1024
        $region40: #{tpu_custom_call.1} parent=31 // pred_fallthru
          _
        %s226 = sand.u32 %s50, 1
        %s227 = scalar_lea.sflag [#allocation4], %s226
        %s228 = sand.u32 %s50, 1
        %s229 = smul.addr %s228, 8
        %s230 = scalar_lea.vmem [#allocation3], %s229
        %p231 = pneg %p63
        %p232 = pneg %p60
        %p233 = pneg %p91
        %p234 = pneg %p88
        %p235 = scmp.lt.s32.totalorder %s27, 0
        %s236 = scalar_select %p235, %s27, 0
        %s237 = scalar_lea.vmem %s2, %s236
        %p238 = pneg %p117
        %p239 = pneg %p114
        %p240 = pneg %p145
        %p241 = pneg %p142
        %s242 = sand.u32 %s132, 1
        %s243 = scalar_lea.sflag [#allocation5], %s242
        %s244 = sand.u32 %s132, 1
        %s245 = smul.addr %s244, 8
        %s246 = scalar_lea.vmem [#allocation8], %s245
        %s247 = smul.u32 16, %s28
        %p248 = scmp.lt.s32.totalorder %s27, 0
        %s249 = scalar_select %p248, %s27, 0
        %s250 = scalar_lea.vmem %s2, %s249
        %p252 = scmp.eq.s32.totalorder %s28, 0
        // Predicated region
        $region41: #{tpu_custom_call.1} parent=31 // pred_check
          %p253 = pneg %p252
        $region42: #{tpu_custom_call.1} parent=31 // pred_check_branch
          %255 = sbr.rel (%p253) target = $region44
        $region43: #{tpu_custom_call.1} parent=31 // pred_region
          %256 = vst [vmem:[#allocation2] sm:$0xff] 0.0
        $region44: #{tpu_custom_call.1} parent=31 // pred_fallthru
          _
        %v257 = vld [vmem:[#allocation2] sm:$0xff]
        %v258 = vld [vmem:[%s217] sm:$0xff]
        %v259 = vpack.c.bf16 %v258, %v258
        %v260 = vld [vmem:[#allocation6] sm:$0xf]
        %v261 = vld [vmem:[#allocation6 + $0x4] sm:$0xf]
        %v262 = vld [vmem:[#allocation6 + $0x8] sm:$0xf]
        %v263 = vld [vmem:[#allocation6 + $0xc] sm:$0xf]
        %v264 = vld [vmem:[#allocation6 + $0x10] sm:$0xf]
        %v265 = vld [vmem:[#allocation6 + $0x14] sm:$0xf]
        %v266 = vld [vmem:[#allocation6 + $0x18] sm:$0xf]
        %v267 = vld [vmem:[#allocation6 + $0x1c] sm:$0xf]
        %v268 = vld [vmem:[#allocation6 + $0x20] sm:$0xf]
        %v269 = vld [vmem:[#allocation6 + $0x24] sm:$0xf]
        %v270 = vld [vmem:[#allocation6 + $0x28] sm:$0xf]
        %v271 = vld [vmem:[#allocation6 + $0x2c] sm:$0xf]
        %v272 = vld [vmem:[#allocation6 + $0x30] sm:$0xf]
        %v273 = vld [vmem:[#allocation6 + $0x34] sm:$0xf]
        %v274 = vld [vmem:[#allocation6 + $0x38] sm:$0xf]
        %v275 = vld [vmem:[#allocation6 + $0x3c] sm:$0xf]
        %v292 = vunpack.c.l.b16 %v260
        %v293 = vunpack.c.l.b16 %v261
        %v294 = vunpack.c.l.b16 %v262
        %v295 = vunpack.c.l.b16 %v263
        %v296 = vunpack.c.l.b16 %v264
        %v297 = vunpack.c.l.b16 %v265
        %v298 = vunpack.c.l.b16 %v266
        %v299 = vunpack.c.l.b16 %v267
        %v300 = vunpack.c.l.b16 %v268
        %v301 = vunpack.c.l.b16 %v269
        %v302 = vunpack.c.l.b16 %v270
        %v303 = vunpack.c.l.b16 %v271
        %v304 = vunpack.c.l.b16 %v272
        %v305 = vunpack.c.l.b16 %v273
        %v306 = vunpack.c.l.b16 %v274
        %v307 = vunpack.c.l.b16 %v275
        %v308 = vpack.c.b16 %v293, %v292
        %v309 = vpack.c.b16 %v295, %v294
        %v310 = vpack.c.b16 %v297, %v296
        %v311 = vpack.c.b16 %v299, %v298
        %v312 = vpack.c.b16 %v301, %v300
        %v313 = vpack.c.b16 %v303, %v302
        %v314 = vpack.c.b16 %v305, %v304
        %v315 = vpack.c.b16 %v307, %v306
        %324 = vmatprep.subr.bf16.mxu0 0
        %325 = vmatpush1.bf16.msra.mxu0 %v315
        %326 = vmatprep.subr.bf16.mxu0 0
        %327 = vmatpush1.bf16.msra.mxu0 %v314
        %328 = vmatprep.subr.bf16.mxu0 0
        %329 = vmatpush1.bf16.msra.mxu0 %v313
        %330 = vmatprep.subr.bf16.mxu0 0
        %331 = vmatpush1.bf16.msra.mxu0 %v312
        %332 = vmatprep.subr.bf16.mxu0 0
        %333 = vmatpush1.bf16.msra.mxu0 %v311
        %334 = vmatprep.subr.bf16.mxu0 0
        %335 = vmatpush1.bf16.msra.mxu0 %v310
        %336 = vmatprep.subr.bf16.mxu0 0
        %337 = vmatpush1.bf16.msra.mxu0 %v309
        %338 = vmatprep.subr.bf16.mxu0 0
        %339 = vmatpush1.bf16.msra.mxu0 %v308
        %340 = vmatprep.subr.bf16.mxu0 0
        %341 = vmatpush2.bf16.msra.mxu0 0
        %342 = vmatprep.subr.bf16.mxu0 0
        %343 = vmatpush2.bf16.msra.mxu0 0
        %344 = vmatprep.subr.bf16.mxu0 0
        %345 = vmatpush2.bf16.msra.mxu0 0
        %346 = vmatprep.subr.bf16.mxu0 0
        %347 = vmatpush2.bf16.msra.mxu0 0
        %348 = vmatprep.subr.bf16.mxu0 0
        %349 = vmatpush2.bf16.msra.mxu0 0
        %350 = vmatprep.subr.bf16.mxu0 0
        %351 = vmatpush2.bf16.msra.mxu0 0
        %352 = vmatprep.subr.bf16.mxu0 0
        %353 = vmatpush2.bf16.msra.mxu0 0
        %354 = vmatprep.subr.bf16.mxu0 0
        %355 = vmatpush2.bf16.msra.mxu0 0
        %356 = vmatprep.mubr.bf16.mxu0 0
        %357 = vmatmul.mubr.bf16.gmra.mxu0 %v259
        %v358 = vpop.f32.mrf.mxu0
        %v359 = vadd.f32 0.0, %v358
        %v360 = vpop.f32.mrf.mxu0
        %v361 = vpop.f32.mrf.mxu0
        %v362 = vpop.f32.mrf.mxu0
        %363 = vdwg.mxu0
        %v364 = vadd.f32 %v257, %v359
        %365 = vst [vmem:[#allocation2] sm:$0xff] %v364
        // Predicated region
        $region45: #{tpu_custom_call.1} parent=31 // pred_check
          %p366 = pneg %p252
        $region46: #{tpu_custom_call.1} parent=31 // pred_check_branch
          %368 = sbr.rel (%p366) target = $region48
        $region47: #{tpu_custom_call.1} parent=31 // pred_region
          %v369 = vld [vmem:[#allocation2] sm:$0xff]
          %v370 = vld [vmem:[%s250] sm:$0x1]
          %v372 = vlaneseq
          %v373 = vshrl.u32 %v372, 7
          %v374 = vsub.s32 0, %v373
          %v375 = vrot.slane %v370, %v374
          %v377 = vadd.f32 %v369, %v375
          %378 = vst [vmem:[%s246] sm:$0xff] %v377
        $region48: #{tpu_custom_call.1} parent=31 // pred_fallthru
          _
        %s379 = sand.u32 %s132, 1
        %s380 = scalar_lea.sflag [#allocation5], %s379
        %s381 = sand.u32 %s132, 1
        %s382 = smul.addr %s381, 8
        %s383 = scalar_lea.vmem [#allocation8], %s382
        // Predicated region
        $region49: #{tpu_custom_call.1} parent=31 // pred_check
          %p384 = pneg %p142
        $region50: #{tpu_custom_call.1} parent=31 // pred_check_branch
          %386 = sbr.rel (%p384) target = $region52
        $region51: #{tpu_custom_call.1} parent=31 // pred_region
          %s388 = ssub.s32 128, 128
          %389 = vsyncadd %s380, %s388
          %s390 = sadd.s32 %s27, %s26
          %s391 = smul.addr %s390, 128
          %s392 = scalar_lea.hbm %s3, %s391
          %s394 = sshll.u32 %s383, 4
          %s395 = int_to_ptr.vmem [resolvable:$true] %s394
          %397 = dma.vmem_to_hbm [thread:$0]  %s395, 128, %s392, %s380
        $region52: #{tpu_custom_call.1} parent=31 // pred_fallthru
          _
      $region32: #{tpu_custom_call.1} parent=5 // pred_fallthru
        _
      %p398 = scmp.le.s32.totalorder 2, %s16
      // Predicated region
      $region53: #{tpu_custom_call.1} parent=5 // pred_check
        %p399 = pneg %p398
      $region54: #{tpu_custom_call.1} parent=5 // pred_check_branch
        %401 = sbr.rel (%p399) target = $region56
      $region55: #{tpu_custom_call.1} parent=5 // pred_region
        %s402 = ssub.s32 %s16, 2
        // Predicated region
        $region57: #{tpu_custom_call.1} parent=55 // pred_check
          %p403 = pneg %p148
        $region58: #{tpu_custom_call.1} parent=55 // pred_check_branch
          %405 = sbr.rel (%p403) target = $region60
        $region59: #{tpu_custom_call.1} parent=55 // pred_region
          %s406 = sand.u32 %s133, 1
          %s407 = scalar_lea.sflag [#allocation5], %s406
          %s408 = sand.u32 %s133, 1
          %s409 = smul.addr %s408, 8
          %s410 = scalar_lea.vmem [#allocation8], %s409
          %411 = dma.done %s407, 128
        $region60: #{tpu_custom_call.1} parent=55 // pred_fallthru
          _
      $region56: #{tpu_custom_call.1} parent=5 // pred_fallthru
        _
    $region6: #{tpu_custom_call.1} parent=1 // loop_footer
      %s20 = sadd.s32 1, %s16
    $region7: #{tpu_custom_call.1} parent=1 // loop_footer_branch
      %15 = sbr.rel target = $region3
    $region8: #{tpu_custom_call.1} parent=1 // loop_exit
      _
    %412 = vsyncpa [#allocation4], 1
    %s413 = scalar_lea.sflag [#allocation4], 1
    %414 = vsyncpa %s413, 1
    %415 = vsyncpa [#allocation7], 1
    %416 = vsyncpa [#allocation5], 1
    %s417 = scalar_lea.sflag [#allocation5], 1
    %418 = vsyncpa %s417, 1

</llo_original>
